<compile_context>
chip_gen: v5e
topology: v5e:2x2
jax: 0.10.0
libtpu: 0.0.40
codegen_flags: <defaults>
</compile_context>

<pallas_src>
import jax
import jax.numpy as jnp
from jax.experimental import pallas as pl
from jax.experimental.pallas import tpu as pltpu


def _round_up(x, m):
    return (x + m - 1) // m * m


def _make_channel_matmul_kernel(apply_relu):
    def kernel(w_ref, shift_ref, x_ref, o_ref):
        # w_ref: (Cout, K)    shift_ref: (Cout, 1)
        # x_ref: (1, K, tp)   o_ref:     (1, Cout, tp)   (pixels lane-dense)
        acc = jnp.dot(w_ref[...], x_ref[0], preferred_element_type=jnp.float32)
        acc = acc + shift_ref[...]
        if apply_relu:
            acc = jnp.maximum(acc, 0.0)
        o_ref[0] = acc.astype(o_ref.dtype)
    return kernel


def channel_matmul_pixels(x_nkp, w, shift, *, apply_relu, tp=2048, out_dtype=None):
    """out[n, co, p] = act(sum_k w[co, k] * x[n, k, p] + shift[co]).

    x_nkp: (N, K, P) with the pixel axis last.  w: (Cout, K).  shift: (Cout,).
    """
    N, K, P = x_nkp.shape
    Cout = w.shape[0]
    out_dtype = out_dtype or x_nkp.dtype

    # Lane-aligned pixel tile: as large as requested (default 2048) but never
    # larger than the 128-aligned pixel count.
    tp = max(128, min(_round_up(tp, 128), _round_up(P, 128)))
    P_pad = _round_up(P, tp)
    if P_pad != P:
        x_nkp = jnp.pad(x_nkp, ((0, 0), (0, 0), (0, P_pad - P)))
    n_ptiles = P_pad // tp

    # Optional: cast x_nkp / w to bfloat16 here to halve HBM traffic on this
    # memory-bound op (accumulation stays f32 via preferred_element_type).
    w = w.astype(jnp.float32)
    shift2d = shift.reshape(Cout, 1).astype(jnp.float32)

    cost = pl.CostEstimate(
        flops=2 * N * P_pad * K * Cout,
        transcendentals=0,
        bytes_accessed=4 * (N * K * P_pad + Cout * K + N * Cout * P_pad),
    )

    out = pl.pallas_call(
        _make_channel_matmul_kernel(apply_relu),
        out_shape=jax.ShapeDtypeStruct((N, Cout, P_pad), out_dtype),
        grid_spec=pltpu.PrefetchScalarGridSpec(
            num_scalar_prefetch=0,
            grid=(N, n_ptiles),
            in_specs=[
                pl.BlockSpec((Cout, K), lambda n, p: (0, 0)),    # resident weight
                pl.BlockSpec((Cout, 1), lambda n, p: (0, 0)),    # resident shift
                pl.BlockSpec((1, K, tp), lambda n, p: (n, 0, p)),
            ],
            out_specs=pl.BlockSpec((1, Cout, tp), lambda n, p: (n, 0, p)),
        ),
        compiler_params=pltpu.CompilerParams(
            dimension_semantics=("parallel", "parallel"),
            vmem_limit_bytes=48 << 20,   # headroom vs. v7x's 64 MiB physical VMEM
        ),
        cost_estimate=cost,
    )(w, shift2d, x_nkp)

    if P_pad != P:
        out = out[:, :, :P]
    return out


def conv1x1_bias(x_nchw, weight, bias, *, tp=2048):
    """nn.Conv2d(Cin, Cout, kernel_size=1): weight (Cout, Cin, 1, 1), bias (Cout,)."""
    N, Cin, H, W = x_nchw.shape
    Cout = weight.shape[0]
    x_nkp = x_nchw.reshape(N, Cin, H * W)                 # free reshape (pixels last)
    out = channel_matmul_pixels(x_nkp, weight.reshape(Cout, Cin), bias,
                                apply_relu=False, tp=tp)
    return out.reshape(N, Cout, H, W)                     # free reshape back to NCHW


def conv3x3_bn_relu(x_nchw, weight, gamma, beta, mean, var, *, eps=1e-5, tp=2048):
    """Conv2d(Cin, Cout, k=3, pad=1, bias=False) + BatchNorm2d (inference) + ReLU."""
    N, Cin, H, W = x_nchw.shape
    Cout = weight.shape[0]

    # im2col glue: pad spatially and lay the 9 taps along the contraction axis
    # so the kernel stays a lane-dense (Cout, 9*Cin) @ (9*Cin, pixels) matmul.
    xp = jnp.pad(x_nchw, ((0, 0), (0, 0), (1, 1), (1, 1)))
    taps = [xp[:, :, dy:dy + H, dx:dx + W] for dy in range(3) for dx in range(3)]
    patches = jnp.stack(taps, axis=1).reshape(N, 9 * Cin, H * W)   # (N, 9*Cin, P)

    w2d = jnp.transpose(weight, (0, 2, 3, 1)).reshape(Cout, 9 * Cin)

    # Fold inference BatchNorm into the matmul: y = scale * conv(x) + shift.
    scale = gamma * jax.lax.rsqrt(var + eps)
    shift = beta - mean * scale
    w_folded = w2d * scale[:, None]

    out = channel_matmul_pixels(patches, w_folded, shift, apply_relu=True, tp=tp)
    return out.reshape(N, Cout, H, W)


def up_forward(x1, x2, params, *, eps=1e-5, tp=2048):
    """Pallas forward of Up (DySample omitted — see TODO in __main__)."""
    # self.up[1]: 1x1 conv with bias (Pallas kernel).
    x1 = conv1x1_bias(x1, params["up_w"], params["up_b"], tp=tp)

    # F.pad to match x2's spatial size (no-op when the sizes already match).
    diffY = x2.shape[2] - x1.shape[2]
    diffX = x2.shape[3] - x1.shape[3]
    x1 = jnp.pad(x1, ((0, 0), (0, 0),
                      (diffY // 2, diffY - diffY // 2),
                      (diffX // 2, diffX - diffX // 2)))

    # torch.cat([x2, x1], dim=1).
    x = jnp.concatenate([x2, x1], axis=1)

    # DoubleConv: (3x3 conv no-bias + BN + ReLU) x 2 (Pallas kernels).
    x = conv3x3_bn_relu(x, params["c1_w"], params["bn1_g"], params["bn1_b"],
                        params["bn1_m"], params["bn1_v"], eps=eps, tp=tp)
    x = conv3x3_bn_relu(x, params["c2_w"], params["bn2_g"], params["bn2_b"],
                        params["bn2_m"], params["bn2_v"], eps=eps, tp=tp)
    return x


def up_forward_ref(x1, x2, params, *, eps=1e-5):
    """Pure-JAX (XLA) reference for the same forward pass."""
    w = params["up_w"][:, :, 0, 0]
    x1 = jnp.einsum("oi,nihw->nohw", w, x1) + params["up_b"][None, :, None, None]

    diffY = x2.shape[2] - x1.shape[2]
    diffX = x2.shape[3] - x1.shape[3]
    x1 = jnp.pad(x1, ((0, 0), (0, 0),
                      (diffY // 2, diffY - diffY // 2),
                      (diffX // 2, diffX - diffX // 2)))
    x = jnp.concatenate([x2, x1], axis=1)

    def conv_bn_relu(x, w, g, b, m, v):
        y = jax.lax.conv_general_dilated(
            x, w, window_strides=(1, 1), padding=((1, 1), (1, 1)),
            dimension_numbers=("NCHW", "OIHW", "NCHW"))
        scale = g * jax.lax.rsqrt(v + eps)
        y = y * scale[None, :, None, None] + (b - m * scale)[None, :, None, None]
        return jnp.maximum(y, 0.0)

    x = conv_bn_relu(x, params["c1_w"], params["bn1_g"], params["bn1_b"],
                     params["bn1_m"], params["bn1_v"])
    x = conv_bn_relu(x, params["c2_w"], params["bn2_g"], params["bn2_b"],
                     params["bn2_m"], params["bn2_v"])
    return x


if __name__ == "__main__":
    # Up(in_channels=8, out_channels=8): x1 and x2 each carry 4 channels,
    # spatial 16x16, batch 2 (small shapes consistent with the module).
    N, in_channels, out_channels, H, W = 2, 8, 8, 16, 16
    half = in_channels // 2            # channels of x1/x2 and DoubleConv mid

    key = jax.random.PRNGKey(0)
    ks = jax.random.split(key, 14)

    # TODO(synk): DySample (dynamic-offset 2x upsampler) is an external dependency
    # not defined in the spec, so it is not implemented; x1 is built directly at
    # the post-upsample resolution (same spatial size as x2).
    x1 = jax.random.normal(ks[0], (N, half, H, W), jnp.float32)
    x2 = jax.random.normal(ks[1], (N, half, H, W), jnp.float32)

    params = {
        # Up.up[1]: Conv2d(half, half, kernel_size=1) with bias.
        "up_w": jax.random.normal(ks[2], (half, half, 1, 1), jnp.float32) * 0.2,
        "up_b": jax.random.normal(ks[3], (half,), jnp.float32) * 0.1,
        # DoubleConv(in_channels, out_channels, mid=half), inference-mode BN params.
        "c1_w": jax.random.normal(ks[4], (half, in_channels, 3, 3), jnp.float32) * 0.1,
        "bn1_g": 1.0 + 0.1 * jax.random.normal(ks[5], (half,), jnp.float32),
        "bn1_b": 0.1 * jax.random.normal(ks[6], (half,), jnp.float32),
        "bn1_m": 0.1 * jax.random.normal(ks[7], (half,), jnp.float32),
        "bn1_v": jax.random.uniform(ks[8], (half,), jnp.float32, 0.5, 1.5),
        "c2_w": jax.random.normal(ks[9], (out_channels, half, 3, 3), jnp.float32) * 0.1,
        "bn2_g": 1.0 + 0.1 * jax.random.normal(ks[10], (out_channels,), jnp.float32),
        "bn2_b": 0.1 * jax.random.normal(ks[11], (out_channels,), jnp.float32),
        "bn2_m": 0.1 * jax.random.normal(ks[12], (out_channels,), jnp.float32),
        "bn2_v": jax.random.uniform(ks[13], (out_channels,), jnp.float32, 0.5, 1.5),
    }

    out = up_forward(x1, x2, params)
    out = jax.block_until_ready(out)

    ref = up_forward_ref(x1, x2, params)
    assert out.shape == (N, out_channels, H, W), out.shape
    err = float(jnp.max(jnp.abs(out - ref)))
    assert jnp.allclose(out, ref, atol=1e-4, rtol=1e-4), f"max abs err {err}"

    print("KERNEL_OK")
</pallas_src>

<mosaic_0001>
module attributes {stable_mosaic.version = 11 : i64} {
  func.func @kernel(%arg0: i32, %arg1: i32, %arg2: memref<4x4xf32, #tpu.memory_space<vmem>>, %arg3: memref<4x1xf32, #tpu.memory_space<vmem>>, %arg4: memref<1x4x256xf32, #tpu.memory_space<vmem>>, %arg5: memref<1x4x256xf32, #tpu.memory_space<vmem>>) attributes {dimension_semantics = [#tpu.dimension_semantics<parallel>, #tpu.dimension_semantics<parallel>], iteration_bounds = array<i64: 2, 1>, scalar_prefetch = 0 : i64, scratch_operands = 0 : i64, tpu.core_type = #tpu.core_type<tc>, window_params = [{pipeline_mode = #tpu.pipeline_mode<synchronous>, transform_indices = @transform_0, window_bounds = array<i64: 4, 4>}, {pipeline_mode = #tpu.pipeline_mode<synchronous>, transform_indices = @transform_1, window_bounds = array<i64: 4, 1>}, {transform_indices = @transform_2, window_bounds = array<i64: 1, 4, 256>}, {transform_indices = @transform_3, window_bounds = array<i64: 1, 4, 256>}]} {
    %c0 = arith.constant 0 : index
    %c0_0 = arith.constant 0 : index
    %0 = vector.load %arg2[%c0, %c0_0] : memref<4x4xf32, #tpu.memory_space<vmem>>, vector<4x4xf32>
    %c0_1 = arith.constant 0 : index
    %c0_2 = arith.constant 0 : index
    %c0_3 = arith.constant 0 : index
    %1 = vector.load %arg4[%c0_1, %c0_2, %c0_3] : memref<1x4x256xf32, #tpu.memory_space<vmem>>, vector<1x4x256xf32>
    %2 = vector.shape_cast %1 : vector<1x4x256xf32> to vector<4x256xf32>
    %cst = arith.constant dense<0.000000e+00> : vector<4x256xf32>
    %3 = tpu.matmul %0, %2, %cst {dimension_numbers = #tpu.dot_dimension_numbers<[1], [0], [0], [1], [0, 0, 1, 1], [], []>} : vector<4x4xf32>, vector<4x256xf32>, vector<4x256xf32> -> vector<4x256xf32>
    %c0_4 = arith.constant 0 : index
    %c0_5 = arith.constant 0 : index
    %4 = vector.load %arg3[%c0_4, %c0_5] : memref<4x1xf32, #tpu.memory_space<vmem>>, vector<4x1xf32>
    %5 = vector.broadcast %4 : vector<4x1xf32> to vector<4x256xf32>
    %6 = arith.addf %3, %5 : vector<4x256xf32>
    %c0_6 = arith.constant 0 : index
    %c0_7 = arith.constant 0 : index
    %c0_8 = arith.constant 0 : index
    %7 = vector.load %arg5[%c0_6, %c0_7, %c0_8] : memref<1x4x256xf32, #tpu.memory_space<vmem>>, vector<1x4x256xf32>
    %8 = vector.shape_cast %7 : vector<1x4x256xf32> to vector<4x256xf32>
    %9 = vector.shape_cast %6 : vector<4x256xf32> to vector<1x4x256xf32>
    tpu.vector_store %arg5[%c0_6, %c0_7, %c0_8], %9 {strides = array<i32>} : memref<1x4x256xf32, #tpu.memory_space<vmem>>, vector<1x4x256xf32>,
    return
  }
  func.func @transform_0(%arg0: i32, %arg1: i32) -> (i32, i32) {
    %c0_i32 = arith.constant 0 : i32
    %c0_i32_0 = arith.constant 0 : i32
    %c0_i32_1 = arith.constant 0 : i32
    return %c0_i32, %c0_i32_0 : i32, i32
  }
  func.func @transform_1(%arg0: i32, %arg1: i32) -> (i32, i32) {
    %c0_i32 = arith.constant 0 : i32
    %c0_i32_0 = arith.constant 0 : i32
    %c0_i32_1 = arith.constant 0 : i32
    return %c0_i32, %c0_i32_0 : i32, i32
  }
  func.func @transform_2(%arg0: i32, %arg1: i32) -> (i32, i32, i32) {
    %c0_i32 = arith.constant 0 : i32
    %c0_i32_0 = arith.constant 0 : i32
    return %arg0, %c0_i32, %arg1 : i32, i32, i32
  }
  func.func @transform_3(%arg0: i32, %arg1: i32) -> (i32, i32, i32) {
    %c0_i32 = arith.constant 0 : i32
    %c0_i32_0 = arith.constant 0 : i32
    return %arg0, %c0_i32, %arg1 : i32, i32, i32
  }
}

</mosaic_0001>

<llo_original>
// kernel: tpu_custom_call.1
$region0: #{tpu_custom_call.1}
  #allocation0 [shape = 'u32[]', space=smem, size = 0x4, offset = 0x4, fixed_abs, tag = 'smem constant byte address 0x4 - core index']
  #allocation1 [shape = 'u32[72,128]{1,0:T(1,128)}', space=vmem, size = 0x9000, scoped, tag = 'internal scratch']
  %s0 = inlined_call_operand.vmem [shape: f32[4,4], index: 0, kind: input, shape index: {}]
  %s1 = inlined_call_operand.vmem [shape: f32[4,1], index: 1, kind: input, shape index: {}]
  %s2 = inlined_call_operand.hbm [shape: f32[2,4,256], index: 2, kind: input, shape index: {}]
  %s3 = inlined_call_operand.hbm [shape: f32[2,4,256], index: 3, kind: output, shape index: {}]
  %s4 = sld [smem:[#allocation0]]
  $region49: #{tpu_custom_call.1} parent=0
    _
  %s6 = ssub.s32 1, %s4
  %s7 = scalar_select 0, %s6, %s4
  $region1: #{tpu_custom_call.1} parent=0
    #allocation2 [shape = 'u8[8192]{0}', space=vmem, size = 0x2000, scoped, tag = 'input window, operand 2']
    #allocation3 [shape = 's32[2]{0}', space=sflag, size = 0x8, scoped, tag = 'scoped memory for tpu_custom_call.1']
    #allocation4 [shape = 's32[2]{0}', space=sflag, size = 0x8, scoped, tag = 'scoped memory for tpu_custom_call.1']
    #allocation5 [shape = 'u8[8192]{0}', space=vmem, size = 0x2000, scoped, tag = 'output window, operand 0']
    %8 = vsyncpa [#allocation3], 0
    %s9 = scalar_lea.sflag [#allocation3], 1
    %10 = vsyncpa %s9, 0
    %11 = vsyncpa [#allocation4], 0
    %s12 = scalar_lea.sflag [#allocation4], 1
    %13 = vsyncpa %s12, 0
    loop: start=0, step=1, limit=4
    $region2: #{tpu_custom_call.1} parent=1 // loop_pre_header
      _
    $region3: #{tpu_custom_call.1} parent=1 // loop_header
      %s15 = sphi 0, %s19
      %p16 = scmp.ge.s32.totalorder %s15, 4
      %s22 = sphi 0, %s34
      %s23 = sphi 0, %s30
      %s24 = sphi 0, %s22
      %s25 = sphi 0, %s23
      %s26 = sphi 0, %s24
      %s27 = sphi 0, %s25
      %s35 = sphi 0, %s35
      %s37 = sphi 0, %s35
      %s38 = sphi 0, %s37
      %s52 = sphi 0, %s38
      %s56 = sphi 0, %s56
      %s58 = sphi 0, %s56
      %s59 = sphi 0, %s58
      %s73 = sphi 0, %s59
      %s81 = sphi 0, %s83
      %s84 = sphi 0, %s81
      %s85 = sphi 0, %s84
      %s101 = sphi 0, %s85
      %s109 = sphi 0, %s111
      %s112 = sphi 0, %s109
      %s113 = sphi 0, %s112
      %s129 = sphi 0, %s113
    $region4: #{tpu_custom_call.1} parent=1 // loop_header_branch
      %18 = sbr.rel (%p16) target = $region8
    $region5: #{tpu_custom_call.1} parent=1 // loop_body
      %s20 = ssub.s32 %s15, 1
      %s21 = ssub.s32 %s15, 2
      %s28 = sadd.s32 1, %s23
      %p29 = scmp.ge.s32.totalorder %s28, 1
      %s30 = scalar_select %p29, 0, %s28
      %s31 = sadd.s32 1, %s22
      %s32 = scalar_select %p29, %s31, %s22
      %p33 = scmp.ge.s32.totalorder %s32, 2
      %s34 = scalar_select %p33, 0, %s32
      %s36 = sadd.s32 %s35, 1
      %p39 = scmp.eq.s32.totalorder %s15, 1
      %p40 = scmp.ne.s32.totalorder %s35, %s37
      %p41 = scmp.eq.s32.totalorder %s15, 0
      %p42 = por %p40, %p41
      %p43 = scmp.ne.s32.totalorder %s35, %s37
      %p44 = scmp.eq.s32.totalorder %s20, 1
      %p45 = por %p43, %p44
      %p46 = scmp.ne.s32.totalorder %s37, %s38
      %p47 = scmp.eq.s32.totalorder %s20, 0
      %p48 = por %p46, %p47
      %p49 = scmp.ne.s32.totalorder %s37, %s38
      %p50 = scmp.eq.s32.totalorder %s21, 1
      %p51 = por %p49, %p50
      %p53 = scmp.ne.s32.totalorder %s38, %s52
      %p54 = scmp.eq.s32.totalorder %s21, 0
      %p55 = por %p53, %p54
      %s57 = sadd.s32 %s56, 1
      %p60 = scmp.eq.s32.totalorder %s15, 1
      %p61 = scmp.ne.s32.totalorder %s56, %s58
      %p62 = scmp.eq.s32.totalorder %s15, 0
      %p63 = por %p61, %p62
      %p64 = scmp.ne.s32.totalorder %s56, %s58
      %p65 = scmp.eq.s32.totalorder %s20, 1
      %p66 = por %p64, %p65
      %p67 = scmp.ne.s32.totalorder %s58, %s59
      %p68 = scmp.eq.s32.totalorder %s20, 0
      %p69 = por %p67, %p68
      %p70 = scmp.ne.s32.totalorder %s58, %s59
      %p71 = scmp.eq.s32.totalorder %s21, 1
      %p72 = por %p70, %p71
      %p74 = scmp.ne.s32.totalorder %s59, %s73
      %p75 = scmp.eq.s32.totalorder %s21, 0
      %p76 = por %p74, %p75
      %s77 = ssub.s32 %s22, %s34
      %s78 = ssub.s32 %s23, %s30
      %s79 = sor.u32 %s77, %s78
      %p80 = scmp.eq.s32.totalorder %s79, 0
      %s82 = sadd.s32 %s81, 1
      %s83 = scalar_select %p80, %s81, %s82
      %p86 = pneg %p80
      %p87 = scmp.eq.s32.totalorder %s15, 1
      %p88 = por %p86, %p87
      %p89 = scmp.ne.s32.totalorder %s81, %s84
      %p90 = scmp.eq.s32.totalorder %s15, 0
      %p91 = por %p89, %p90
      %p92 = scmp.ne.s32.totalorder %s81, %s84
      %p93 = scmp.eq.s32.totalorder %s20, 1
      %p94 = por %p92, %p93
      %p95 = scmp.ne.s32.totalorder %s84, %s85
      %p96 = scmp.eq.s32.totalorder %s20, 0
      %p97 = por %p95, %p96
      %p98 = scmp.ne.s32.totalorder %s84, %s85
      %p99 = scmp.eq.s32.totalorder %s21, 1
      %p100 = por %p98, %p99
      %p102 = scmp.ne.s32.totalorder %s85, %s101
      %p103 = scmp.eq.s32.totalorder %s21, 0
      %p104 = por %p102, %p103
      %s105 = ssub.s32 %s22, %s34
      %s106 = ssub.s32 %s23, %s30
      %s107 = sor.u32 %s105, %s106
      %p108 = scmp.eq.s32.totalorder %s107, 0
      %s110 = sadd.s32 %s109, 1
      %s111 = scalar_select %p108, %s109, %s110
      %p114 = pneg %p108
      %p115 = scmp.eq.s32.totalorder %s15, 1
      %p116 = por %p114, %p115
      %p117 = scmp.ne.s32.totalorder %s109, %s112
      %p118 = scmp.eq.s32.totalorder %s15, 0
      %p119 = por %p117, %p118
      %p120 = scmp.ne.s32.totalorder %s109, %s112
      %p121 = scmp.eq.s32.totalorder %s20, 1
      %p122 = por %p120, %p121
      %p123 = scmp.ne.s32.totalorder %s112, %s113
      %p124 = scmp.eq.s32.totalorder %s20, 0
      %p125 = por %p123, %p124
      %p126 = scmp.ne.s32.totalorder %s112, %s113
      %p127 = scmp.eq.s32.totalorder %s21, 1
      %p128 = por %p126, %p127
      %p130 = scmp.ne.s32.totalorder %s113, %s129
      %p131 = scmp.eq.s32.totalorder %s21, 0
      %p132 = por %p130, %p131
      %p133 = scmp.le.s32.totalorder 1, %s15
      %p134 = scmp.lt.s32.totalorder %s15, 3
      %p135 = pnand %p133, %p134
      %p136 = pneg %p135
      // Predicated region
      $region9: #{tpu_custom_call.1} parent=5 // pred_check
        _
      $region10: #{tpu_custom_call.1} parent=5 // pred_check_branch
        %138 = sbr.rel (%p135) target = $region12
      $region11: #{tpu_custom_call.1} parent=5 // pred_region
        %s139 = ssub.s32 %s15, 1
        // Predicated region
        $region13: #{tpu_custom_call.1} parent=11 // pred_check
          %p140 = pneg %p48
        $region14: #{tpu_custom_call.1} parent=11 // pred_check_branch
          %142 = sbr.rel (%p140) target = $region16
        $region15: #{tpu_custom_call.1} parent=11 // pred_region
          _
        $region16: #{tpu_custom_call.1} parent=11 // pred_fallthru
          _
        // Predicated region
        $region17: #{tpu_custom_call.1} parent=11 // pred_check
          %p143 = pneg %p69
        $region18: #{tpu_custom_call.1} parent=11 // pred_check_branch
          %145 = sbr.rel (%p143) target = $region20
        $region19: #{tpu_custom_call.1} parent=11 // pred_region
          _
        $region20: #{tpu_custom_call.1} parent=11 // pred_fallthru
          _
      $region12: #{tpu_custom_call.1} parent=5 // pred_fallthru
        _
      %p146 = scmp.lt.s32.totalorder %s15, 2
      // Predicated region
      $region21: #{tpu_custom_call.1} parent=5 // pred_check
        %p147 = pneg %p146
      $region22: #{tpu_custom_call.1} parent=5 // pred_check_branch
        %149 = sbr.rel (%p147) target = $region24
      $region23: #{tpu_custom_call.1} parent=5 // pred_region
        // Predicated region
        $region25: #{tpu_custom_call.1} parent=23 // pred_check
          %p150 = pneg %p91
        $region26: #{tpu_custom_call.1} parent=23 // pred_check_branch
          %152 = sbr.rel (%p150) target = $region28
        $region27: #{tpu_custom_call.1} parent=23 // pred_region
          %s153 = sand.u32 %s81, 1
          %s154 = scalar_lea.sflag [#allocation3], %s153
          %s155 = sand.u32 %s81, 1
          %s156 = smul.addr %s155, 8
          %s157 = scalar_lea.vmem [#allocation2], %s156
          %s158 = smul.u32 2, %s23
          %160 = vsyncadd %s154, 0
          %s161 = smul.addr %s22, 2
          %s162 = sadd.s32 %s158, %s161
          %s163 = smul.addr %s162, 4
          %s164 = scalar_lea.hbm %s2, %s163
          %s166 = sshll.u32 %s164, 4
          %s167 = int_to_ptr.hbm [resolvable:$true] %s166
          %s168 = sshll.u32 %s157, 4
          %s169 = int_to_ptr.vmem [resolvable:$true] %s168
          %171 = dma.hbm_to_vmem [thread:$0]  %s167, 128, %s169, %s154
        $region28: #{tpu_custom_call.1} parent=23 // pred_fallthru
          _
      $region24: #{tpu_custom_call.1} parent=5 // pred_fallthru
        _
      %p172 = scmp.le.s32.totalorder 1, %s15
      %p173 = scmp.lt.s32.totalorder %s15, 3
      %p174 = pnand %p172, %p173
      %p175 = pneg %p174
      // Predicated region
      $region29: #{tpu_custom_call.1} parent=5 // pred_check
        _
      $region30: #{tpu_custom_call.1} parent=5 // pred_check_branch
        %177 = sbr.rel (%p174) target = $region32
      $region31: #{tpu_custom_call.1} parent=5 // pred_region
        %s178 = ssub.s32 %s15, 1
        %s179 = sand.u32 %s84, 1
        %s180 = scalar_lea.sflag [#allocation3], %s179
        %s181 = sand.u32 %s84, 1
        %s182 = smul.addr %s181, 8
        %s183 = scalar_lea.vmem [#allocation2], %s182
        // Predicated region
        $region33: #{tpu_custom_call.1} parent=31 // pred_check
          %p184 = pneg %p97
        $region34: #{tpu_custom_call.1} parent=31 // pred_check_branch
          %186 = sbr.rel (%p184) target = $region36
        $region35: #{tpu_custom_call.1} parent=31 // pred_region
          %188 = dma.done %s180, 128
        $region36: #{tpu_custom_call.1} parent=31 // pred_fallthru
          _
        %p189 = pneg %p48
        %p190 = pneg %p45
        %p191 = pneg %p69
        %p192 = pneg %p66
        %s193 = sand.u32 %s84, 1
        %s194 = scalar_lea.sflag [#allocation3], %s193
        %s195 = sand.u32 %s84, 1
        %s196 = smul.addr %s195, 8
        %s197 = scalar_lea.vmem [#allocation2], %s196
        %p198 = pneg %p97
        %p199 = pneg %p94
        %p200 = pneg %p125
        %p201 = pneg %p122
        %s202 = sand.u32 %s112, 1
        %s203 = scalar_lea.sflag [#allocation4], %s202
        %s204 = sand.u32 %s112, 1
        %s205 = smul.addr %s204, 8
        %s206 = scalar_lea.vmem [#allocation5], %s205
        %s207 = smul.u32 2, %s25
        %s208 = smul.u32 2, %s25
        %v209 = vld [vmem:[%s0] sm:$0xf]
        %v210 = vld [vmem:[%s183] sm:$0xff]
        %v211 = vld [vmem:[%s1] sm:$0xf]
        %213 = vset.pattern.permute.xlu0 0
        %214 = vperm.xlu0 %213, %v211
        %v215 = vpop.permute.xlu0 %214
        %218 = vst [vmem:[#allocation1] ss:$2 sm:$0xff] %v210
        %v219 = vld.sshfl [vmem:[#allocation1] sm:$0xff pattern:$0x75316420]
        %v220 = vld.sshfl [vmem:[#allocation1 + $0x8] sm:$0xff pattern:$0x75316420]
        %vm221 = vcmask 31744
        %v223 = vsel %vm221, %v209, 0
        %vm225 = vcmask 1043456
        %v226 = vsel %vm225, %v219, 0
        %v228 = vsel %vm225, %v220, 0
        %230 = vmatpush.msra.mxu0 0.0
        %231 = vmatpush.msra.mxu0 0.0
        %232 = vmatpush.msra.mxu0 0.0
        %233 = vmatpush.msra.mxu0 0.0
        %234 = vmatpush.msra.mxu0 0.0
        %235 = vmatpush.msra.mxu0 0.0
        %236 = vmatpush.msra.mxu0 0.0
        %237 = vmatpush.msra.mxu0 0.0
        %238 = vmatpush.msra.mxu0 0.0
        %239 = vmatpush.msra.mxu0 0.0
        %240 = vmatpush.msra.mxu0 0.0
        %241 = vmatpush.msra.mxu0 0.0
        %242 = vmatpush.msra.mxu0 0.0
        %243 = vmatpush.msra.mxu0 0.0
        %244 = vmatpush.msra.mxu0 0.0
        %245 = vmatpush.msra.mxu0 %v226
        %246 = vmatmul.f32.gmra.mxu0 %v223
        %v247 = vpop.f32.mrf.mxu0
        %v248 = vadd.f32 %v215, %v247
        %249 = vdwg.mxu0
        %250 = vmatpush.msra.mxu0 0.0
        %251 = vmatpush.msra.mxu0 0.0
        %252 = vmatpush.msra.mxu0 0.0
        %253 = vmatpush.msra.mxu0 0.0
        %254 = vmatpush.msra.mxu0 0.0
        %255 = vmatpush.msra.mxu0 0.0
        %256 = vmatpush.msra.mxu0 0.0
        %257 = vmatpush.msra.mxu0 0.0
        %258 = vmatpush.msra.mxu0 0.0
        %259 = vmatpush.msra.mxu0 0.0
        %260 = vmatpush.msra.mxu0 0.0
        %261 = vmatpush.msra.mxu0 0.0
        %262 = vmatpush.msra.mxu0 0.0
        %263 = vmatpush.msra.mxu0 0.0
        %264 = vmatpush.msra.mxu0 0.0
        %265 = vmatpush.msra.mxu0 %v228
        %266 = vmatmul.f32.gmra.mxu0 %v223
        %v267 = vpop.f32.mrf.mxu0
        %v268 = vadd.f32 %v215, %v267
        %269 = vdwg.mxu0
        %v272 = vrot.slane %v268, 4
        %v273 = vsel %vm225, %v248, %v272
        %275 = vst [vmem:[%s206] sm:$0xff] %v273
        %s276 = sand.u32 %s112, 1
        %s277 = scalar_lea.sflag [#allocation4], %s276
        %s278 = sand.u32 %s112, 1
        %s279 = smul.addr %s278, 8
        %s280 = scalar_lea.vmem [#allocation5], %s279
        // Predicated region
        $region37: #{tpu_custom_call.1} parent=31 // pred_check
          %p281 = pneg %p122
        $region38: #{tpu_custom_call.1} parent=31 // pred_check_branch
          %283 = sbr.rel (%p281) target = $region40
        $region39: #{tpu_custom_call.1} parent=31 // pred_region
          %s284 = smul.u32 2, %s25
          %286 = vsyncadd %s277, 0
          %s287 = smul.addr %s24, 2
          %s288 = sadd.s32 %s284, %s287
          %s289 = smul.addr %s288, 4
          %s290 = scalar_lea.hbm %s3, %s289
          %s292 = sshll.u32 %s280, 4
          %s293 = int_to_ptr.vmem [resolvable:$true] %s292
          %s294 = sshll.u32 %s290, 4
          %s295 = int_to_ptr.hbm [resolvable:$true] %s294
          %297 = dma.vmem_to_hbm [thread:$0]  %s293, 128, %s295, %s277
        $region40: #{tpu_custom_call.1} parent=31 // pred_fallthru
          _
      $region32: #{tpu_custom_call.1} parent=5 // pred_fallthru
        _
      %p298 = scmp.le.s32.totalorder 2, %s15
      // Predicated region
      $region41: #{tpu_custom_call.1} parent=5 // pred_check
        %p299 = pneg %p298
      $region42: #{tpu_custom_call.1} parent=5 // pred_check_branch
        %301 = sbr.rel (%p299) target = $region44
      $region43: #{tpu_custom_call.1} parent=5 // pred_region
        %s302 = ssub.s32 %s15, 2
        // Predicated region
        $region45: #{tpu_custom_call.1} parent=43 // pred_check
          %p303 = pneg %p128
        $region46: #{tpu_custom_call.1} parent=43 // pred_check_branch
          %305 = sbr.rel (%p303) target = $region48
        $region47: #{tpu_custom_call.1} parent=43 // pred_region
          %s306 = sand.u32 %s113, 1
          %s307 = scalar_lea.sflag [#allocation4], %s306
          %s308 = sand.u32 %s113, 1
          %s309 = smul.addr %s308, 8
          %s310 = scalar_lea.vmem [#allocation5], %s309
          %312 = dma.done %s307, 128
        $region48: #{tpu_custom_call.1} parent=43 // pred_fallthru
          _
      $region44: #{tpu_custom_call.1} parent=5 // pred_fallthru
        _
    $region6: #{tpu_custom_call.1} parent=1 // loop_footer
      %s19 = sadd.s32 1, %s15
    $region7: #{tpu_custom_call.1} parent=1 // loop_footer_branch
      %14 = sbr.rel target = $region3
    $region8: #{tpu_custom_call.1} parent=1 // loop_exit
      _
    %313 = vsyncpa [#allocation3], 1
    %s314 = scalar_lea.sflag [#allocation3], 1
    %315 = vsyncpa %s314, 1
    %316 = vsyncpa [#allocation4], 1
    %s317 = scalar_lea.sflag [#allocation4], 1
    %318 = vsyncpa %s317, 1

</llo_original>
